<compile_context>
chip_gen: v7x
topology: tpu7x:2x2x1
jax: 0.10.0
libtpu: 0.0.40
codegen_flags: <defaults>
</compile_context>

<pallas_src>
import numpy as np
import jax
import jax.numpy as jnp
from jax import lax
from jax.experimental import pallas as pl
from jax.experimental.pallas import tpu as pltpu

INV_LENGTHSCALE = 8.0   # halton encoding sharpness: exp((cos - 1) * INV_LENGTHSCALE)
EPS = 1e-12             # added to ||d||^2 before rsqrt
DPAD = 8                # direction components padded 3 -> 8 (aligned MXU contraction dim)


def _round_up(x, m):
    return ((x + m - 1) // m) * m


# ----------------------------- Pallas kernel -----------------------------
def direction_ray_encoder_kernel(dir_ref, hdir_ref, w1_ref, b1_ref, w2_ref, b2_ref, out_ref):
    d = dir_ref[...].astype(jnp.float32)                            # (TB, 8); cols 3..7 are zero

    sq = jnp.sum(d * d, axis=-1, keepdims=True)                     # (TB, 1)
    inv_norm = lax.rsqrt(sq + EPS)                                  # (TB, 1)  EUP slot
    norm = sq * inv_norm                                            # (TB, 1) ~= ||d||

    # K=8 contraction on the MXU (idle at this point); normalization deferred so
    # only ONE (TB,1)->(TB,N) broadcast of inv_norm is needed (no lane-sparse
    # per-component broadcasts of a unit vector).
    cos = jnp.dot(d, hdir_ref[...].astype(jnp.float32),
                  preferred_element_type=jnp.float32)               # (TB, N)
    t = (cos * inv_norm - 1.0) * INV_LENGTHSCALE                    # (TB, N)

    # Halton vMF-style response rescaled by ||direction||. exp runs in the MLP
    # weight dtype: bf16 on v6e/v7x (packed EUP), f32 on v5e (f32 weights there).
    wdt = w1_ref.dtype
    rays = jnp.exp(t.astype(wdt)) * norm.astype(wdt)                # (TB, N)

    # ray_encoder MLP on the MXU: N -> H (ReLU) -> OUT_PAD, f32 accumulation.
    a1 = jnp.dot(rays, w1_ref[...], preferred_element_type=jnp.float32)
    a1 = jnp.maximum(a1 + b1_ref[...], 0.0)                         # (TB, H) f32; bias pre-cast f32
    out = jnp.dot(a1.astype(w2_ref.dtype), w2_ref[...],
                  preferred_element_type=jnp.float32) + b2_ref[...]
    out_ref[...] = out.astype(out_ref.dtype)


# ----------------------------- wrapper -----------------------------
def direction_ray_encoder(direction, halton_dirs, w1, b1, w2, b2, *,
                          block_b=None, out_dtype=jnp.float32):
    """Batched Pallas forward.

    block_b=None: auto — single unpadded step for small B (v5e-friendly),
    256 rows for large B (fills the 256-wide MXU on v6e/v7x). On v7x with
    small B pass block_b=round_up(ceil(B/2), 8) so both TensorCores get work.
    """
    B, ddim = direction.shape
    k_h, n_rays = halton_dirs.shape
    n_rays_w, hid = w1.shape
    out = w2.shape[1]
    assert ddim == k_h and n_rays == n_rays_w and ddim <= DPAD

    if block_b is None:
        block_b = min(256, _round_up(B, 8))

    # Pad batch to a tile multiple and pad the contraction dim 3 -> 8 (zero rows
    # in the halton dirs, zero cols in direction: contraction is unchanged).
    b_pad = _round_up(B, block_b)
    dir_p = jnp.zeros((b_pad, DPAD), direction.dtype).at[:B, :ddim].set(direction)
    hdir_p = jnp.zeros((DPAD, n_rays), halton_dirs.dtype).at[:ddim, :].set(halton_dirs)

    # Lane-dense output: pad OUT up to a multiple of 128 (unmasked vst).
    out_pad = max(128, _round_up(out, 128))
    if out_pad != out:
        w2p = jnp.zeros((hid, out_pad), w2.dtype).at[:, :out].set(w2)
    else:
        w2p = w2
    # Biases are tiny: pre-cast to f32 here so the kernel has no per-step casts.
    b1f = b1.astype(jnp.float32).reshape(1, hid)
    b2f = jnp.zeros((1, out_pad), jnp.float32).at[:, :out].set(
        b2.astype(jnp.float32).reshape(1, out))

    res = pl.pallas_call(
        direction_ray_encoder_kernel,
        out_shape=jax.ShapeDtypeStruct((b_pad, out_pad), out_dtype),
        grid=(b_pad // block_b,),
        in_specs=[
            pl.BlockSpec((block_b, DPAD), lambda i: (i, 0)),    # direction tile per grid step
            pl.BlockSpec((DPAD, n_rays), lambda i: (0, 0)),     # halton dirs, VMEM-resident
            pl.BlockSpec((n_rays, hid), lambda i: (0, 0)),      # W1 resident
            pl.BlockSpec((1, hid), lambda i: (0, 0)),           # b1 resident (f32)
            pl.BlockSpec((hid, out_pad), lambda i: (0, 0)),     # W2 resident
            pl.BlockSpec((1, out_pad), lambda i: (0, 0)),       # b2 resident (f32)
        ],
        out_specs=pl.BlockSpec((block_b, out_pad), lambda i: (i, 0)),
        compiler_params=pltpu.CompilerParams(
            dimension_semantics=("parallel",)),                 # shards grid steps across TCs (v7x)
    )(dir_p, hdir_p, w1, b1f, w2p, b2f)

    return res[:B, :out]


# ----------------------- deterministic parameter init -----------------------
def _radical_inverse(i, base):
    f, r = 1.0, 0.0
    while i > 0:
        f /= base
        r += f * (i % base)
        i //= base
    return r


def make_halton_sphere_dirs(n):
    """2-D Halton sequence (bases 2,3) mapped uniformly to the unit sphere. Returns (3, n)."""
    u1 = np.array([_radical_inverse(i + 1, 2) for i in range(n)], dtype=np.float64)
    u2 = np.array([_radical_inverse(i + 1, 3) for i in range(n)], dtype=np.float64)
    phi = 2.0 * np.pi * u1
    z = 1.0 - 2.0 * u2
    s = np.sqrt(np.maximum(1.0 - z * z, 0.0))
    dirs = np.stack([s * np.cos(phi), s * np.sin(phi), z], axis=0)  # (3, n)
    return jnp.asarray(dirs, dtype=jnp.float32)


# ----------------------------- pure-JAX reference -----------------------------
def reference(direction, halton_dirs, w1, b1, w2, b2):
    sq = jnp.sum(direction * direction, axis=-1, keepdims=True)
    inv_norm = lax.rsqrt(sq + EPS)
    norm = sq * inv_norm
    unit = direction * inv_norm
    cos = unit @ halton_dirs
    rays = jnp.exp((cos - 1.0) * INV_LENGTHSCALE) * norm
    h = jnp.maximum(rays @ w1 + b1, 0.0)
    return h @ w2 + b2


if __name__ == "__main__":
    B, DDIM, N_RAYS, HID, OUT = 160, 3, 256, 128, 64

    key = jax.random.PRNGKey(0)
    k_dir, k1, k2 = jax.random.split(key, 3)

    direction = jax.random.normal(k_dir, (B, DDIM), jnp.float32)
    halton_dirs = make_halton_sphere_dirs(N_RAYS)                       # (3, N)
    w1 = jax.random.normal(k1, (N_RAYS, HID), jnp.float32) / np.sqrt(N_RAYS)
    b1 = jnp.zeros((1, HID), jnp.float32)
    w2 = jax.random.normal(k2, (HID, OUT), jnp.float32) / np.sqrt(HID)
    b2 = jnp.zeros((1, OUT), jnp.float32)

    ref = reference(direction, halton_dirs, w1, b1, w2, b2)

    # 1) f32 weights, auto tile (B=160 -> single unpadded grid step).
    out_f32 = jax.block_until_ready(
        direction_ray_encoder(direction, halton_dirs, w1, b1, w2, b2))
    assert out_f32.shape == (B, OUT)
    np.testing.assert_allclose(np.asarray(out_f32), np.asarray(ref), rtol=1e-2, atol=1e-2)

    # 2) Explicit block_b=128 (v7x-style >=2 parallel steps; exercises batch padding).
    out_2step = jax.block_until_ready(
        direction_ray_encoder(direction, halton_dirs, w1, b1, w2, b2, block_b=128))
    np.testing.assert_allclose(np.asarray(out_2step), np.asarray(ref), rtol=1e-2, atol=1e-2)

    # 3) bf16 MLP weights (v6e/v7x MXU-native path; bf16 exp), f32 accumulation.
    out_bf16w = jax.block_until_ready(
        direction_ray_encoder(direction, halton_dirs,
                              w1.astype(jnp.bfloat16), b1,
                              w2.astype(jnp.bfloat16), b2))
    np.testing.assert_allclose(np.asarray(out_bf16w), np.asarray(ref), rtol=6e-2, atol=6e-2)

    # 4) bf16 output (halves writeback bytes), f32 weights.
    out_bf16o = jax.block_until_ready(
        direction_ray_encoder(direction, halton_dirs, w1, b1, w2, b2,
                              out_dtype=jnp.bfloat16))
    np.testing.assert_allclose(np.asarray(out_bf16o, dtype=np.float32), np.asarray(ref),
                               rtol=3e-2, atol=3e-2)

    print("KERNEL_OK")
</pallas_src>

<mosaic_0001>
module attributes {stable_mosaic.version = 11 : i64} {
  func.func @direction_ray_encoder_kernel(%arg0: i32, %arg1: memref<160x8xf32, #tpu.memory_space<vmem>>, %arg2: memref<8x256xf32, #tpu.memory_space<vmem>>, %arg3: memref<256x128xf32, #tpu.memory_space<vmem>>, %arg4: memref<1x128xf32, #tpu.memory_space<vmem>>, %arg5: memref<128x128xf32, #tpu.memory_space<vmem>>, %arg6: memref<1x128xf32, #tpu.memory_space<vmem>>, %arg7: memref<160x128xf32, #tpu.memory_space<vmem>>) attributes {dimension_semantics = [#tpu.dimension_semantics<parallel>], iteration_bounds = array<i64: 1>, scalar_prefetch = 0 : i64, scratch_operands = 0 : i64, tpu.core_type = #tpu.core_type<tc>, window_params = [{transform_indices = @transform_0, window_bounds = array<i64: 160, 8>}, {pipeline_mode = #tpu.pipeline_mode<synchronous>, transform_indices = @transform_1, window_bounds = array<i64: 8, 256>}, {pipeline_mode = #tpu.pipeline_mode<synchronous>, transform_indices = @transform_2, window_bounds = array<i64: 256, 128>}, {pipeline_mode = #tpu.pipeline_mode<synchronous>, transform_indices = @transform_3, window_bounds = array<i64: 1, 128>}, {pipeline_mode = #tpu.pipeline_mode<synchronous>, transform_indices = @transform_4, window_bounds = array<i64: 128, 128>}, {pipeline_mode = #tpu.pipeline_mode<synchronous>, transform_indices = @transform_5, window_bounds = array<i64: 1, 128>}, {transform_indices = @transform_6, window_bounds = array<i64: 160, 128>}]} {
    %c0 = arith.constant 0 : index
    %c0_0 = arith.constant 0 : index
    %0 = vector.load %arg1[%c0, %c0_0] : memref<160x8xf32, #tpu.memory_space<vmem>>, vector<160x8xf32>
    %1 = arith.mulf %0, %0 : vector<160x8xf32>
    %cst = arith.constant dense<0.000000e+00> : vector<160xf32>
    %2 = vector.multi_reduction <add>, %1, %cst [1] : vector<160x8xf32> to vector<160xf32>
    %3 = vector.shape_cast %2 : vector<160xf32> to vector<160x1xf32>
    %cst_1 = arith.constant 9.99999996E-13 : f32
    %4 = vector.broadcast %cst_1 : f32 to vector<160x1xf32>
    %5 = arith.addf %3, %4 : vector<160x1xf32>
    %6 = math.rsqrt %5 : vector<160x1xf32>
    %7 = arith.mulf %3, %6 : vector<160x1xf32>
    %c0_2 = arith.constant 0 : index
    %c0_3 = arith.constant 0 : index
    %8 = vector.load %arg2[%c0_2, %c0_3] : memref<8x256xf32, #tpu.memory_space<vmem>>, vector<8x256xf32>
    %cst_4 = arith.constant dense<0.000000e+00> : vector<160x256xf32>
    %9 = tpu.matmul %0, %8, %cst_4 {dimension_numbers = #tpu.dot_dimension_numbers<[1], [0], [0], [1], [0, 0, 1, 1], [], []>} : vector<160x8xf32>, vector<8x256xf32>, vector<160x256xf32> -> vector<160x256xf32>
    %10 = vector.broadcast %6 : vector<160x1xf32> to vector<160x256xf32>
    %11 = arith.mulf %9, %10 : vector<160x256xf32>
    %cst_5 = arith.constant 1.000000e+00 : f32
    %12 = vector.broadcast %cst_5 : f32 to vector<160x256xf32>
    %13 = arith.subf %11, %12 : vector<160x256xf32>
    %cst_6 = arith.constant 8.000000e+00 : f32
    %14 = vector.broadcast %cst_6 : f32 to vector<160x256xf32>
    %15 = arith.mulf %13, %14 : vector<160x256xf32>
    %16 = math.exp %15 : vector<160x256xf32>
    %17 = vector.broadcast %7 : vector<160x1xf32> to vector<160x256xf32>
    %18 = arith.mulf %16, %17 : vector<160x256xf32>
    %c0_7 = arith.constant 0 : index
    %c0_8 = arith.constant 0 : index
    %19 = vector.load %arg3[%c0_7, %c0_8] : memref<256x128xf32, #tpu.memory_space<vmem>>, vector<256x128xf32>
    %cst_9 = arith.constant dense<0.000000e+00> : vector<160x128xf32>
    %20 = tpu.matmul %18, %19, %cst_9 {dimension_numbers = #tpu.dot_dimension_numbers<[1], [0], [0], [1], [0, 0, 1, 1], [], []>} : vector<160x256xf32>, vector<256x128xf32>, vector<160x128xf32> -> vector<160x128xf32>
    %c0_10 = arith.constant 0 : index
    %c0_11 = arith.constant 0 : index
    %21 = vector.load %arg4[%c0_10, %c0_11] : memref<1x128xf32, #tpu.memory_space<vmem>>, vector<1x128xf32>
    %22 = vector.broadcast %21 : vector<1x128xf32> to vector<160x128xf32>
    %23 = arith.addf %20, %22 : vector<160x128xf32>
    %cst_12 = arith.constant 0.000000e+00 : f32
    %24 = vector.broadcast %cst_12 : f32 to vector<160x128xf32>
    %25 = arith.maximumf %23, %24 : vector<160x128xf32>
    %c0_13 = arith.constant 0 : index
    %c0_14 = arith.constant 0 : index
    %26 = vector.load %arg5[%c0_13, %c0_14] : memref<128x128xf32, #tpu.memory_space<vmem>>, vector<128x128xf32>
    %cst_15 = arith.constant dense<0.000000e+00> : vector<160x128xf32>
    %27 = tpu.matmul %25, %26, %cst_15 {dimension_numbers = #tpu.dot_dimension_numbers<[1], [0], [0], [1], [0, 0, 1, 1], [], []>} : vector<160x128xf32>, vector<128x128xf32>, vector<160x128xf32> -> vector<160x128xf32>
    %c0_16 = arith.constant 0 : index
    %c0_17 = arith.constant 0 : index
    %28 = vector.load %arg6[%c0_16, %c0_17] : memref<1x128xf32, #tpu.memory_space<vmem>>, vector<1x128xf32>
    %29 = vector.broadcast %28 : vector<1x128xf32> to vector<160x128xf32>
    %30 = arith.addf %27, %29 : vector<160x128xf32>
    %c0_18 = arith.constant 0 : index
    %c0_19 = arith.constant 0 : index
    %31 = vector.load %arg7[%c0_18, %c0_19] : memref<160x128xf32, #tpu.memory_space<vmem>>, vector<160x128xf32>
    tpu.vector_store %arg7[%c0_18, %c0_19], %30 {strides = array<i32>} : memref<160x128xf32, #tpu.memory_space<vmem>>, vector<160x128xf32>,
    return
  }
  func.func @transform_0(%arg0: i32) -> (i32, i32) {
    %c0_i32 = arith.constant 0 : i32
    %c0_i32_0 = arith.constant 0 : i32
    return %arg0, %c0_i32 : i32, i32
  }
  func.func @transform_1(%arg0: i32) -> (i32, i32) {
    %c0_i32 = arith.constant 0 : i32
    %c0_i32_0 = arith.constant 0 : i32
    %c0_i32_1 = arith.constant 0 : i32
    return %c0_i32, %c0_i32_0 : i32, i32
  }
  func.func @transform_2(%arg0: i32) -> (i32, i32) {
    %c0_i32 = arith.constant 0 : i32
    %c0_i32_0 = arith.constant 0 : i32
    %c0_i32_1 = arith.constant 0 : i32
    return %c0_i32, %c0_i32_0 : i32, i32
  }
  func.func @transform_3(%arg0: i32) -> (i32, i32) {
    %c0_i32 = arith.constant 0 : i32
    %c0_i32_0 = arith.constant 0 : i32
    %c0_i32_1 = arith.constant 0 : i32
    return %c0_i32, %c0_i32_0 : i32, i32
  }
  func.func @transform_4(%arg0: i32) -> (i32, i32) {
    %c0_i32 = arith.constant 0 : i32
    %c0_i32_0 = arith.constant 0 : i32
    %c0_i32_1 = arith.constant 0 : i32
    return %c0_i32, %c0_i32_0 : i32, i32
  }
  func.func @transform_5(%arg0: i32) -> (i32, i32) {
    %c0_i32 = arith.constant 0 : i32
    %c0_i32_0 = arith.constant 0 : i32
    %c0_i32_1 = arith.constant 0 : i32
    return %c0_i32, %c0_i32_0 : i32, i32
  }
  func.func @transform_6(%arg0: i32) -> (i32, i32) {
    %c0_i32 = arith.constant 0 : i32
    %c0_i32_0 = arith.constant 0 : i32
    return %arg0, %c0_i32 : i32, i32
  }
}

</mosaic_0001>

<llo_original>
// kernel: tpu_custom_call.1
$region0: #{tpu_custom_call.1}
  #allocation0 [shape = 'u32[]', space=smem, size = 0x4, offset = 0x4, fixed_abs, tag = 'smem constant byte address 0x4 - core index']
  #allocation1 [shape = 'u32[144,128]{1,0:T(1,128)}', space=vmem, size = 0x12000, scoped, tag = 'internal scratch']
  %s0 = inlined_call_operand.vmem [shape: f32[160,8], index: 0, kind: input, shape index: {}]
  %s1 = inlined_call_operand.vmem [shape: f32[8,256], index: 1, kind: input, shape index: {}]
  %s2 = inlined_call_operand.hbm [shape: f32[256,128], index: 2, kind: input, shape index: {}]
  %s3 = inlined_call_operand.vmem [shape: f32[1,128], index: 3, kind: input, shape index: {}]
  %s4 = inlined_call_operand.vmem [shape: f32[128,128], index: 4, kind: input, shape index: {}]
  %s5 = inlined_call_operand.vmem [shape: f32[1,128], index: 5, kind: input, shape index: {}]
  %s6 = inlined_call_operand.hbm [shape: f32[160,128], index: 6, kind: output, shape index: {}]
  %s7 = sld [smem:[#allocation0]]
  $region38: #{tpu_custom_call.1} parent=0
    _
  %s9 = ssub.s32 1, %s7
  %s10 = scalar_select 0, %s9, %s7
  $region1: #{tpu_custom_call.1} parent=0
    #allocation2 [shape = 'u8[131072]{0}', space=vmem, size = 0x20000, scoped, tag = 'input window, operand 2, single buffered']
    #allocation3 [shape = 's32[1]{0}', space=sflag, size = 0x4, scoped, tag = 'scoped memory for tpu_custom_call.1']
    #allocation4 [shape = 's32[1]{0}', space=sflag, size = 0x4, scoped, tag = 'scoped memory for tpu_custom_call.1']
    #allocation5 [shape = 'u8[81920]{0}', space=vmem, size = 0x14000, scoped, tag = 'output window, operand 0, single buffered']
    %11 = vsyncpa [#allocation3], 0
    %12 = vsyncpa [#allocation4], 0
    // Predicated region
    $region2: #{tpu_custom_call.1} parent=1 // pred_check
      _
    $region3: #{tpu_custom_call.1} parent=1 // pred_check_branch
      %14 = sbr.rel (0) target = $region5
    $region4: #{tpu_custom_call.1} parent=1 // pred_region
      _
    $region5: #{tpu_custom_call.1} parent=1 // pred_fallthru
      _
    // Predicated region
    $region6: #{tpu_custom_call.1} parent=1 // pred_check
      _
    $region7: #{tpu_custom_call.1} parent=1 // pred_check_branch
      %16 = sbr.rel (0) target = $region9
    $region8: #{tpu_custom_call.1} parent=1 // pred_region
      _
    $region9: #{tpu_custom_call.1} parent=1 // pred_fallthru
      _
    // Predicated region
    $region10: #{tpu_custom_call.1} parent=1 // pred_check
      _
    $region11: #{tpu_custom_call.1} parent=1 // pred_check_branch
      %18 = sbr.rel (0) target = $region13
    $region12: #{tpu_custom_call.1} parent=1 // pred_region
      %s20 = ssub.s32 4096, 4096
      %21 = vsyncadd [#allocation3], %s20
      %s22 = sshll.u32 [#allocation2], 4
      %s23 = int_to_ptr.vmem [resolvable:$true] %s22
      %28 = dma.hbm_to_vmem [thread:$0]  %s2, 4096, %s23, [#allocation3], 128, 128, 8
    $region13: #{tpu_custom_call.1} parent=1 // pred_fallthru
      _
    // Predicated region
    $region14: #{tpu_custom_call.1} parent=1 // pred_check
      _
    $region15: #{tpu_custom_call.1} parent=1 // pred_check_branch
      %30 = sbr.rel (0) target = $region17
    $region16: #{tpu_custom_call.1} parent=1 // pred_region
      _
    $region17: #{tpu_custom_call.1} parent=1 // pred_fallthru
      _
    // Predicated region
    $region18: #{tpu_custom_call.1} parent=1 // pred_check
      _
    $region19: #{tpu_custom_call.1} parent=1 // pred_check_branch
      %32 = sbr.rel (0) target = $region21
    $region20: #{tpu_custom_call.1} parent=1 // pred_region
      _
    $region21: #{tpu_custom_call.1} parent=1 // pred_fallthru
      _
    // Predicated region
    $region22: #{tpu_custom_call.1} parent=1 // pred_check
      _
    $region23: #{tpu_custom_call.1} parent=1 // pred_check_branch
      %34 = sbr.rel (0) target = $region25
    $region24: #{tpu_custom_call.1} parent=1 // pred_region
      _
    $region25: #{tpu_custom_call.1} parent=1 // pred_fallthru
      _
    // Predicated region
    $region26: #{tpu_custom_call.1} parent=1 // pred_check
      _
    $region27: #{tpu_custom_call.1} parent=1 // pred_check_branch
      %36 = sbr.rel (0) target = $region29
    $region28: #{tpu_custom_call.1} parent=1 // pred_region
      %37 = dma.done [#allocation3], 4096
    $region29: #{tpu_custom_call.1} parent=1 // pred_fallthru
      _
    %v38 = vld [vmem:[%s0] sm:$0xff]
    %v39 = vld [vmem:[%s0 + $0x8] sm:$0xff]
    %v40 = vld [vmem:[%s0 + $0x10] sm:$0xff]
    %v41 = vld [vmem:[%s0 + $0x18] sm:$0xff]
    %v42 = vld [vmem:[%s0 + $0x20] sm:$0xff]
    %v43 = vld [vmem:[%s0 + $0x28] sm:$0xff]
    %v44 = vld [vmem:[%s0 + $0x30] sm:$0xff]
    %v45 = vld [vmem:[%s0 + $0x38] sm:$0xff]
    %v46 = vld [vmem:[%s0 + $0x40] sm:$0xff]
    %v47 = vld [vmem:[%s0 + $0x48] sm:$0xff]
    %v48 = vld [vmem:[%s0 + $0x50] sm:$0xff]
    %v49 = vld [vmem:[%s0 + $0x58] sm:$0xff]
    %v50 = vld [vmem:[%s0 + $0x60] sm:$0xff]
    %v51 = vld [vmem:[%s0 + $0x68] sm:$0xff]
    %v52 = vld [vmem:[%s0 + $0x70] sm:$0xff]
    %v53 = vld [vmem:[%s0 + $0x78] sm:$0xff]
    %v54 = vld [vmem:[%s0 + $0x80] sm:$0xff]
    %v55 = vld [vmem:[%s0 + $0x88] sm:$0xff]
    %v56 = vld [vmem:[%s0 + $0x90] sm:$0xff]
    %v57 = vld [vmem:[%s0 + $0x98] sm:$0xff]
    %v58 = vmul.f32 %v38, %v38
    %v59 = vmul.f32 %v39, %v39
    %v60 = vmul.f32 %v40, %v40
    %v61 = vmul.f32 %v41, %v41
    %v62 = vmul.f32 %v42, %v42
    %v63 = vmul.f32 %v43, %v43
    %v64 = vmul.f32 %v44, %v44
    %v65 = vmul.f32 %v45, %v45
    %v66 = vmul.f32 %v46, %v46
    %v67 = vmul.f32 %v47, %v47
    %v68 = vmul.f32 %v48, %v48
    %v69 = vmul.f32 %v49, %v49
    %v70 = vmul.f32 %v50, %v50
    %v71 = vmul.f32 %v51, %v51
    %v72 = vmul.f32 %v52, %v52
    %v73 = vmul.f32 %v53, %v53
    %v74 = vmul.f32 %v54, %v54
    %v75 = vmul.f32 %v55, %v55
    %v76 = vmul.f32 %v56, %v56
    %v77 = vmul.f32 %v57, %v57
    %vm78 = vcmask 64512
    %v79 = vsel %vm78, %v58, 0.0
    %80 = vadd.xlane.f32.xlu0 %v79
    %v81 = vpop.xlane.xlu0 %80
    %v82 = vsel %vm78, %v59, 0.0
    %83 = vadd.xlane.f32.xlu0 %v82
    %v84 = vpop.xlane.xlu0 %83
    %v85 = vsel %vm78, %v60, 0.0
    %86 = vadd.xlane.f32.xlu0 %v85
    %v87 = vpop.xlane.xlu0 %86
    %v88 = vsel %vm78, %v61, 0.0
    %89 = vadd.xlane.f32.xlu0 %v88
    %v90 = vpop.xlane.xlu0 %89
    %v91 = vsel %vm78, %v62, 0.0
    %92 = vadd.xlane.f32.xlu0 %v91
    %v93 = vpop.xlane.xlu0 %92
    %v94 = vsel %vm78, %v63, 0.0
    %95 = vadd.xlane.f32.xlu0 %v94
    %v96 = vpop.xlane.xlu0 %95
    %v97 = vsel %vm78, %v64, 0.0
    %98 = vadd.xlane.f32.xlu0 %v97
    %v99 = vpop.xlane.xlu0 %98
    %v100 = vsel %vm78, %v65, 0.0
    %101 = vadd.xlane.f32.xlu0 %v100
    %v102 = vpop.xlane.xlu0 %101
    %v103 = vsel %vm78, %v66, 0.0
    %104 = vadd.xlane.f32.xlu0 %v103
    %v105 = vpop.xlane.xlu0 %104
    %v106 = vsel %vm78, %v67, 0.0
    %107 = vadd.xlane.f32.xlu0 %v106
    %v108 = vpop.xlane.xlu0 %107
    %v109 = vsel %vm78, %v68, 0.0
    %110 = vadd.xlane.f32.xlu0 %v109
    %v111 = vpop.xlane.xlu0 %110
    %v112 = vsel %vm78, %v69, 0.0
    %113 = vadd.xlane.f32.xlu0 %v112
    %v114 = vpop.xlane.xlu0 %113
    %v115 = vsel %vm78, %v70, 0.0
    %116 = vadd.xlane.f32.xlu0 %v115
    %v117 = vpop.xlane.xlu0 %116
    %v118 = vsel %vm78, %v71, 0.0
    %119 = vadd.xlane.f32.xlu0 %v118
    %v120 = vpop.xlane.xlu0 %119
    %v121 = vsel %vm78, %v72, 0.0
    %122 = vadd.xlane.f32.xlu0 %v121
    %v123 = vpop.xlane.xlu0 %122
    %v124 = vsel %vm78, %v73, 0.0
    %125 = vadd.xlane.f32.xlu0 %v124
    %v126 = vpop.xlane.xlu0 %125
    %v127 = vsel %vm78, %v74, 0.0
    %128 = vadd.xlane.f32.xlu0 %v127
    %v129 = vpop.xlane.xlu0 %128
    %v130 = vsel %vm78, %v75, 0.0
    %131 = vadd.xlane.f32.xlu0 %v130
    %v132 = vpop.xlane.xlu0 %131
    %v133 = vsel %vm78, %v76, 0.0
    %134 = vadd.xlane.f32.xlu0 %v133
    %v135 = vpop.xlane.xlu0 %134
    %v136 = vsel %vm78, %v77, 0.0
    %137 = vadd.xlane.f32.xlu0 %v136
    %v138 = vpop.xlane.xlu0 %137
    %v139 = vadd.f32 %v81, 1e-12
    %v140 = vadd.f32 %v84, 1e-12
    %v141 = vadd.f32 %v87, 1e-12
    %v142 = vadd.f32 %v90, 1e-12
    %v143 = vadd.f32 %v93, 1e-12
    %v144 = vadd.f32 %v96, 1e-12
    %v145 = vadd.f32 %v99, 1e-12
    %v146 = vadd.f32 %v102, 1e-12
    %v147 = vadd.f32 %v105, 1e-12
    %v148 = vadd.f32 %v108, 1e-12
    %v149 = vadd.f32 %v111, 1e-12
    %v150 = vadd.f32 %v114, 1e-12
    %v151 = vadd.f32 %v117, 1e-12
    %v152 = vadd.f32 %v120, 1e-12
    %v153 = vadd.f32 %v123, 1e-12
    %v154 = vadd.f32 %v126, 1e-12
    %v155 = vadd.f32 %v129, 1e-12
    %v156 = vadd.f32 %v132, 1e-12
    %v157 = vadd.f32 %v135, 1e-12
    %v158 = vadd.f32 %v138, 1e-12
    %v159 = vrsqrt.pop %v139
    %v160 = vrsqrt.pop %v140
    %v161 = vrsqrt.pop %v141
    %v162 = vrsqrt.pop %v142
    %v163 = vrsqrt.pop %v143
    %v164 = vrsqrt.pop %v144
    %v165 = vrsqrt.pop %v145
    %v166 = vrsqrt.pop %v146
    %v167 = vrsqrt.pop %v147
    %v168 = vrsqrt.pop %v148
    %v169 = vrsqrt.pop %v149
    %v170 = vrsqrt.pop %v150
    %v171 = vrsqrt.pop %v151
    %v172 = vrsqrt.pop %v152
    %v173 = vrsqrt.pop %v153
    %v174 = vrsqrt.pop %v154
    %v175 = vrsqrt.pop %v155
    %v176 = vrsqrt.pop %v156
    %v177 = vrsqrt.pop %v157
    %v178 = vrsqrt.pop %v158
    %v179 = vmul.f32 %v81, %v159
    %v180 = vmul.f32 %v84, %v160
    %v181 = vmul.f32 %v87, %v161
    %v182 = vmul.f32 %v90, %v162
    %v183 = vmul.f32 %v93, %v163
    %v184 = vmul.f32 %v96, %v164
    %v185 = vmul.f32 %v99, %v165
    %v186 = vmul.f32 %v102, %v166
    %v187 = vmul.f32 %v105, %v167
    %v188 = vmul.f32 %v108, %v168
    %v189 = vmul.f32 %v111, %v169
    %v190 = vmul.f32 %v114, %v170
    %v191 = vmul.f32 %v117, %v171
    %v192 = vmul.f32 %v120, %v172
    %v193 = vmul.f32 %v123, %v173
    %v194 = vmul.f32 %v126, %v174
    %v195 = vmul.f32 %v129, %v175
    %v196 = vmul.f32 %v132, %v176
    %v197 = vmul.f32 %v135, %v177
    %v198 = vmul.f32 %v138, %v178
    %v199 = vld [vmem:[%s1] sm:$0xff]
    %v200 = vld [vmem:[%s1 + $0x8] sm:$0xff]
    %v202 = vsel %vm78, %v38, 0
    %v205 = vsel %vm78, %v39, 0
    %v208 = vsel %vm78, %v40, 0
    %v211 = vsel %vm78, %v41, 0
    %v214 = vsel %vm78, %v42, 0
    %v217 = vsel %vm78, %v43, 0
    %v220 = vsel %vm78, %v44, 0
    %v223 = vsel %vm78, %v45, 0
    %v226 = vsel %vm78, %v46, 0
    %v229 = vsel %vm78, %v47, 0
    %v232 = vsel %vm78, %v48, 0
    %v235 = vsel %vm78, %v49, 0
    %v238 = vsel %vm78, %v50, 0
    %v241 = vsel %vm78, %v51, 0
    %v244 = vsel %vm78, %v52, 0
    %v247 = vsel %vm78, %v53, 0
    %v250 = vsel %vm78, %v54, 0
    %v253 = vsel %vm78, %v55, 0
    %v256 = vsel %vm78, %v56, 0
    %v259 = vsel %vm78, %v57, 0
    %261 = vmatprep.subr.mxu0 %v200
    %262 = vmatpush1.msra.mxu0 %v199
    %263 = vmatprep.subr.mxu0 0.0
    %264 = vmatpush1.msra.mxu0 0.0
    %265 = vmatprep.subr.mxu0 0.0
    %266 = vmatpush1.msra.mxu0 0.0
    %267 = vmatprep.subr.mxu0 0.0
    %268 = vmatpush1.msra.mxu0 0.0
    %269 = vmatprep.subr.mxu0 0.0
    %270 = vmatpush1.msra.mxu0 0.0
    %271 = vmatprep.subr.mxu0 0.0
    %272 = vmatpush1.msra.mxu0 0.0
    %273 = vmatprep.subr.mxu0 0.0
    %274 = vmatpush1.msra.mxu0 0.0
    %275 = vmatprep.subr.mxu0 0.0
    %276 = vmatpush1.msra.mxu0 0.0
    %277 = vmatprep.subr.mxu0 0.0
    %278 = vmatpush1.msra.mxu0 0.0
    %279 = vmatprep.subr.mxu0 0.0
    %280 = vmatpush1.msra.mxu0 0.0
    %281 = vmatprep.subr.mxu0 0.0
    %282 = vmatpush1.msra.mxu0 0.0
    %283 = vmatprep.subr.mxu0 0.0
    %284 = vmatpush1.msra.mxu0 0.0
    %285 = vmatprep.subr.mxu0 0.0
    %286 = vmatpush1.msra.mxu0 0.0
    %287 = vmatprep.subr.mxu0 0.0
    %288 = vmatpush1.msra.mxu0 0.0
    %289 = vmatprep.subr.mxu0 0.0
    %290 = vmatpush1.msra.mxu0 0.0
    %291 = vmatprep.subr.mxu0 0.0
    %292 = vmatpush1.msra.mxu0 0.0
    %293 = vmatprep.subr.mxu0 0.0
    %294 = vmatpush1.msra.mxu0 0.0
    %295 = vmatprep.subr.mxu0 0.0
    %296 = vmatpush1.msra.mxu0 0.0
    %297 = vmatprep.subr.mxu0 0.0
    %298 = vmatpush1.msra.mxu0 0.0
    %299 = vmatprep.subr.mxu0 0.0
    %300 = vmatpush1.msra.mxu0 0.0
    %301 = vmatprep.subr.mxu0 0.0
    %302 = vmatpush1.msra.mxu0 0.0
    %303 = vmatprep.subr.mxu0 0.0
    %304 = vmatpush1.msra.mxu0 0.0
    %305 = vmatprep.subr.mxu0 0.0
    %306 = vmatpush1.msra.mxu0 0.0
    %307 = vmatprep.subr.mxu0 0.0
    %308 = vmatpush1.msra.mxu0 0.0
    %309 = vmatprep.subr.mxu0 0.0
    %310 = vmatpush1.msra.mxu0 0.0
    %311 = vmatprep.subr.mxu0 0.0
    %312 = vmatpush1.msra.mxu0 0.0
    %313 = vmatprep.subr.mxu0 0.0
    %314 = vmatpush1.msra.mxu0 0.0
    %315 = vmatprep.subr.mxu0 0.0
    %316 = vmatpush1.msra.mxu0 0.0
    %317 = vmatprep.subr.mxu0 0.0
    %318 = vmatpush1.msra.mxu0 0.0
    %319 = vmatprep.subr.mxu0 0.0
    %320 = vmatpush1.msra.mxu0 0.0
    %321 = vmatprep.subr.mxu0 0.0
    %322 = vmatpush1.msra.mxu0 0.0
    %323 = vmatprep.subr.mxu0 0.0
    %324 = vmatpush1.msra.mxu0 0.0
    %325 = vmatprep.mubr.f32.mxu0 0.0
    %326 = vmatmul.mubr.f32.gmra.mrb[0].mxu0 %v202
    %v327 = vpop.f32.mrb[0].mxu0
    %v328 = vadd.f32 0.0, %v327
    %v329 = vpop.f32.mrb[0].mxu0
    %v330 = vadd.f32 0.0, %v329
    %331 = vmatprep.mubr.f32.mxu0 0.0
    %332 = vmatmul.mubr.f32.gmra.mrb[0].mxu0 %v205
    %v333 = vpop.f32.mrb[0].mxu0
    %v334 = vadd.f32 0.0, %v333
    %v335 = vpop.f32.mrb[0].mxu0
    %v336 = vadd.f32 0.0, %v335
    %337 = vmatprep.mubr.f32.mxu0 0.0
    %338 = vmatmul.mubr.f32.gmra.mrb[0].mxu0 %v208
    %v339 = vpop.f32.mrb[0].mxu0
    %v340 = vadd.f32 0.0, %v339
    %v341 = vpop.f32.mrb[0].mxu0
    %v342 = vadd.f32 0.0, %v341
    %343 = vmatprep.mubr.f32.mxu0 0.0
    %344 = vmatmul.mubr.f32.gmra.mrb[0].mxu0 %v211
    %v345 = vpop.f32.mrb[0].mxu0
    %v346 = vadd.f32 0.0, %v345
    %v347 = vpop.f32.mrb[0].mxu0
    %v348 = vadd.f32 0.0, %v347
    %349 = vmatprep.mubr.f32.mxu0 0.0
    %350 = vmatmul.mubr.f32.gmra.mrb[0].mxu0 %v214
    %v351 = vpop.f32.mrb[0].mxu0
    %v352 = vadd.f32 0.0, %v351
    %v353 = vpop.f32.mrb[0].mxu0
    %v354 = vadd.f32 0.0, %v353
    %355 = vmatprep.mubr.f32.mxu0 0.0
    %356 = vmatmul.mubr.f32.gmra.mrb[0].mxu0 %v217
    %v357 = vpop.f32.mrb[0].mxu0
    %v358 = vadd.f32 0.0, %v357
    %v359 = vpop.f32.mrb[0].mxu0
    %v360 = vadd.f32 0.0, %v359
    %361 = vmatprep.mubr.f32.mxu0 0.0
    %362 = vmatmul.mubr.f32.gmra.mrb[0].mxu0 %v220
    %v363 = vpop.f32.mrb[0].mxu0
    %v364 = vadd.f32 0.0, %v363
    %v365 = vpop.f32.mrb[0].mxu0
    %v366 = vadd.f32 0.0, %v365
    %367 = vmatprep.mubr.f32.mxu0 0.0
    %368 = vmatmul.mubr.f32.gmra.mrb[0].mxu0 %v223
    %v369 = vpop.f32.mrb[0].mxu0
    %v370 = vadd.f32 0.0, %v369
    %v371 = vpop.f32.mrb[0].mxu0
    %v372 = vadd.f32 0.0, %v371
    %373 = vmatprep.mubr.f32.mxu0 0.0
    %374 = vmatmul.mubr.f32.gmra.mrb[0].mxu0 %v226
    %v375 = vpop.f32.mrb[0].mxu0
    %v376 = vadd.f32 0.0, %v375
    %v377 = vpop.f32.mrb[0].mxu0
    %v378 = vadd.f32 0.0, %v377
    %379 = vmatprep.mubr.f32.mxu0 0.0
    %380 = vmatmul.mubr.f32.gmra.mrb[0].mxu0 %v229
    %v381 = vpop.f32.mrb[0].mxu0
    %v382 = vadd.f32 0.0, %v381
    %v383 = vpop.f32.mrb[0].mxu0
    %v384 = vadd.f32 0.0, %v383
    %385 = vmatprep.mubr.f32.mxu0 0.0
    %386 = vmatmul.mubr.f32.gmra.mrb[0].mxu0 %v232
    %v387 = vpop.f32.mrb[0].mxu0
    %v388 = vadd.f32 0.0, %v387
    %v389 = vpop.f32.mrb[0].mxu0
    %v390 = vadd.f32 0.0, %v389
    %391 = vmatprep.mubr.f32.mxu0 0.0
    %392 = vmatmul.mubr.f32.gmra.mrb[0].mxu0 %v235
    %v393 = vpop.f32.mrb[0].mxu0
    %v394 = vadd.f32 0.0, %v393
    %v395 = vpop.f32.mrb[0].mxu0
    %v396 = vadd.f32 0.0, %v395
    %397 = vmatprep.mubr.f32.mxu0 0.0
    %398 = vmatmul.mubr.f32.gmra.mrb[0].mxu0 %v238
    %v399 = vpop.f32.mrb[0].mxu0
    %v400 = vadd.f32 0.0, %v399
    %v401 = vpop.f32.mrb[0].mxu0
    %v402 = vadd.f32 0.0, %v401
    %403 = vmatprep.mubr.f32.mxu0 0.0
    %404 = vmatmul.mubr.f32.gmra.mrb[0].mxu0 %v241
    %v405 = vpop.f32.mrb[0].mxu0
    %v406 = vadd.f32 0.0, %v405
    %v407 = vpop.f32.mrb[0].mxu0
    %v408 = vadd.f32 0.0, %v407
    %409 = vmatprep.mubr.f32.mxu0 0.0
    %410 = vmatmul.mubr.f32.gmra.mrb[0].mxu0 %v244
    %v411 = vpop.f32.mrb[0].mxu0
    %v412 = vadd.f32 0.0, %v411
    %v413 = vpop.f32.mrb[0].mxu0
    %v414 = vadd.f32 0.0, %v413
    %415 = vmatprep.mubr.f32.mxu0 0.0
    %416 = vmatmul.mubr.f32.gmra.mrb[0].mxu0 %v247
    %v417 = vpop.f32.mrb[0].mxu0
    %v418 = vadd.f32 0.0, %v417
    %v419 = vpop.f32.mrb[0].mxu0
    %v420 = vadd.f32 0.0, %v419
    %421 = vmatprep.mubr.f32.mxu0 0.0
    %422 = vmatmul.mubr.f32.gmra.mrb[0].mxu0 %v250
    %v423 = vpop.f32.mrb[0].mxu0
    %v424 = vadd.f32 0.0, %v423
    %v425 = vpop.f32.mrb[0].mxu0
    %v426 = vadd.f32 0.0, %v425
    %427 = vmatprep.mubr.f32.mxu0 0.0
    %428 = vmatmul.mubr.f32.gmra.mrb[0].mxu0 %v253
    %v429 = vpop.f32.mrb[0].mxu0
    %v430 = vadd.f32 0.0, %v429
    %v431 = vpop.f32.mrb[0].mxu0
    %v432 = vadd.f32 0.0, %v431
    %433 = vmatprep.mubr.f32.mxu0 0.0
    %434 = vmatmul.mubr.f32.gmra.mrb[0].mxu0 %v256
    %v435 = vpop.f32.mrb[0].mxu0
    %v436 = vadd.f32 0.0, %v435
    %v437 = vpop.f32.mrb[0].mxu0
    %v438 = vadd.f32 0.0, %v437
    %439 = vmatprep.mubr.f32.mxu0 0.0
    %440 = vmatmul.mubr.f32.gmra.mrb[0].mxu0 %v259
    %v441 = vpop.f32.mrb[0].mxu0
    %v442 = vadd.f32 0.0, %v441
    %v443 = vpop.f32.mrb[0].mxu0
    %v444 = vadd.f32 0.0, %v443
    %445 = vdwg.mxu0
    %v446 = vmul.f32 %v328, %v159
    %v447 = vmul.f32 %v330, %v159
    %v448 = vmul.f32 %v334, %v160
    %v449 = vmul.f32 %v336, %v160
    %v450 = vmul.f32 %v340, %v161
    %v451 = vmul.f32 %v342, %v161
    %v452 = vmul.f32 %v346, %v162
    %v453 = vmul.f32 %v348, %v162
    %v454 = vmul.f32 %v352, %v163
    %v455 = vmul.f32 %v354, %v163
    %v456 = vmul.f32 %v358, %v164
    %v457 = vmul.f32 %v360, %v164
    %v458 = vmul.f32 %v364, %v165
    %v459 = vmul.f32 %v366, %v165
    %v460 = vmul.f32 %v370, %v166
    %v461 = vmul.f32 %v372, %v166
    %v462 = vmul.f32 %v376, %v167
    %v463 = vmul.f32 %v378, %v167
    %v464 = vmul.f32 %v382, %v168
    %v465 = vmul.f32 %v384, %v168
    %v466 = vmul.f32 %v388, %v169
    %v467 = vmul.f32 %v390, %v169
    %v468 = vmul.f32 %v394, %v170
    %v469 = vmul.f32 %v396, %v170
    %v470 = vmul.f32 %v400, %v171
    %v471 = vmul.f32 %v402, %v171
    %v472 = vmul.f32 %v406, %v172
    %v473 = vmul.f32 %v408, %v172
    %v474 = vmul.f32 %v412, %v173
    %v475 = vmul.f32 %v414, %v173
    %v476 = vmul.f32 %v418, %v174
    %v477 = vmul.f32 %v420, %v174
    %v478 = vmul.f32 %v424, %v175
    %v479 = vmul.f32 %v426, %v175
    %v480 = vmul.f32 %v430, %v176
    %v481 = vmul.f32 %v432, %v176
    %v482 = vmul.f32 %v436, %v177
    %v483 = vmul.f32 %v438, %v177
    %v484 = vmul.f32 %v442, %v178
    %v485 = vmul.f32 %v444, %v178
    %v486 = vsub.f32 %v446, 1.0
    %v487 = vsub.f32 %v447, 1.0
    %v488 = vsub.f32 %v448, 1.0
    %v489 = vsub.f32 %v449, 1.0
    %v490 = vsub.f32 %v450, 1.0
    %v491 = vsub.f32 %v451, 1.0
    %v492 = vsub.f32 %v452, 1.0
    %v493 = vsub.f32 %v453, 1.0
    %v494 = vsub.f32 %v454, 1.0
    %v495 = vsub.f32 %v455, 1.0
    %v496 = vsub.f32 %v456, 1.0
    %v497 = vsub.f32 %v457, 1.0
    %v498 = vsub.f32 %v458, 1.0
    %v499 = vsub.f32 %v459, 1.0
    %v500 = vsub.f32 %v460, 1.0
    %v501 = vsub.f32 %v461, 1.0
    %v502 = vsub.f32 %v462, 1.0
    %v503 = vsub.f32 %v463, 1.0
    %v504 = vsub.f32 %v464, 1.0
    %v505 = vsub.f32 %v465, 1.0
    %v506 = vsub.f32 %v466, 1.0
    %v507 = vsub.f32 %v467, 1.0
    %v508 = vsub.f32 %v468, 1.0
    %v509 = vsub.f32 %v469, 1.0
    %v510 = vsub.f32 %v470, 1.0
    %v511 = vsub.f32 %v471, 1.0
    %v512 = vsub.f32 %v472, 1.0
    %v513 = vsub.f32 %v473, 1.0
    %v514 = vsub.f32 %v474, 1.0
    %v515 = vsub.f32 %v475, 1.0
    %v516 = vsub.f32 %v476, 1.0
    %v517 = vsub.f32 %v477, 1.0
    %v518 = vsub.f32 %v478, 1.0
    %v519 = vsub.f32 %v479, 1.0
    %v520 = vsub.f32 %v480, 1.0
    %v521 = vsub.f32 %v481, 1.0
    %v522 = vsub.f32 %v482, 1.0
    %v523 = vsub.f32 %v483, 1.0
    %v524 = vsub.f32 %v484, 1.0
    %v525 = vsub.f32 %v485, 1.0
    %v526 = vmul.f32 %v486, 8.0
    %v527 = vmul.f32 %v487, 8.0
    %v528 = vmul.f32 %v488, 8.0
    %v529 = vmul.f32 %v489, 8.0
    %v530 = vmul.f32 %v490, 8.0
    %v531 = vmul.f32 %v491, 8.0
    %v532 = vmul.f32 %v492, 8.0
    %v533 = vmul.f32 %v493, 8.0
    %v534 = vmul.f32 %v494, 8.0
    %v535 = vmul.f32 %v495, 8.0
    %v536 = vmul.f32 %v496, 8.0
    %v537 = vmul.f32 %v497, 8.0
    %v538 = vmul.f32 %v498, 8.0
    %v539 = vmul.f32 %v499, 8.0
    %v540 = vmul.f32 %v500, 8.0
    %v541 = vmul.f32 %v501, 8.0
    %v542 = vmul.f32 %v502, 8.0
    %v543 = vmul.f32 %v503, 8.0
    %v544 = vmul.f32 %v504, 8.0
    %v545 = vmul.f32 %v505, 8.0
    %v546 = vmul.f32 %v506, 8.0
    %v547 = vmul.f32 %v507, 8.0
    %v548 = vmul.f32 %v508, 8.0
    %v549 = vmul.f32 %v509, 8.0
    %v550 = vmul.f32 %v510, 8.0
    %v551 = vmul.f32 %v511, 8.0
    %v552 = vmul.f32 %v512, 8.0
    %v553 = vmul.f32 %v513, 8.0
    %v554 = vmul.f32 %v514, 8.0
    %v555 = vmul.f32 %v515, 8.0
    %v556 = vmul.f32 %v516, 8.0
    %v557 = vmul.f32 %v517, 8.0
    %v558 = vmul.f32 %v518, 8.0
    %v559 = vmul.f32 %v519, 8.0
    %v560 = vmul.f32 %v520, 8.0
    %v561 = vmul.f32 %v521, 8.0
    %v562 = vmul.f32 %v522, 8.0
    %v563 = vmul.f32 %v523, 8.0
    %v564 = vmul.f32 %v524, 8.0
    %v565 = vmul.f32 %v525, 8.0
    %v566 = vmul.f32 %v526, 1.442695
    %v567 = vpow.pop %v566
    %v568 = vmul.f32 %v527, 1.442695
    %v569 = vpow.pop %v568
    %v570 = vmul.f32 %v528, 1.442695
    %v571 = vpow.pop %v570
    %v572 = vmul.f32 %v529, 1.442695
    %v573 = vpow.pop %v572
    %v574 = vmul.f32 %v530, 1.442695
    %v575 = vpow.pop %v574
    %v576 = vmul.f32 %v531, 1.442695
    %v577 = vpow.pop %v576
    %v578 = vmul.f32 %v532, 1.442695
    %v579 = vpow.pop %v578
    %v580 = vmul.f32 %v533, 1.442695
    %v581 = vpow.pop %v580
    %v582 = vmul.f32 %v534, 1.442695
    %v583 = vpow.pop %v582
    %v584 = vmul.f32 %v535, 1.442695
    %v585 = vpow.pop %v584
    %v586 = vmul.f32 %v536, 1.442695
    %v587 = vpow.pop %v586
    %v588 = vmul.f32 %v537, 1.442695
    %v589 = vpow.pop %v588
    %v590 = vmul.f32 %v538, 1.442695
    %v591 = vpow.pop %v590
    %v592 = vmul.f32 %v539, 1.442695
    %v593 = vpow.pop %v592
    %v594 = vmul.f32 %v540, 1.442695
    %v595 = vpow.pop %v594
    %v596 = vmul.f32 %v541, 1.442695
    %v597 = vpow.pop %v596
    %v598 = vmul.f32 %v542, 1.442695
    %v599 = vpow.pop %v598
    %v600 = vmul.f32 %v543, 1.442695
    %v601 = vpow.pop %v600
    %v602 = vmul.f32 %v544, 1.442695
    %v603 = vpow.pop %v602
    %v604 = vmul.f32 %v545, 1.442695
    %v605 = vpow.pop %v604
    %v606 = vmul.f32 %v546, 1.442695
    %v607 = vpow.pop %v606
    %v608 = vmul.f32 %v547, 1.442695
    %v609 = vpow.pop %v608
    %v610 = vmul.f32 %v548, 1.442695
    %v611 = vpow.pop %v610
    %v612 = vmul.f32 %v549, 1.442695
    %v613 = vpow.pop %v612
    %v614 = vmul.f32 %v550, 1.442695
    %v615 = vpow.pop %v614
    %v616 = vmul.f32 %v551, 1.442695
    %v617 = vpow.pop %v616
    %v618 = vmul.f32 %v552, 1.442695
    %v619 = vpow.pop %v618
    %v620 = vmul.f32 %v553, 1.442695
    %v621 = vpow.pop %v620
    %v622 = vmul.f32 %v554, 1.442695
    %v623 = vpow.pop %v622
    %v624 = vmul.f32 %v555, 1.442695
    %v625 = vpow.pop %v624
    %v626 = vmul.f32 %v556, 1.442695
    %v627 = vpow.pop %v626
    %v628 = vmul.f32 %v557, 1.442695
    %v629 = vpow.pop %v628
    %v630 = vmul.f32 %v558, 1.442695
    %v631 = vpow.pop %v630
    %v632 = vmul.f32 %v559, 1.442695
    %v633 = vpow.pop %v632
    %v634 = vmul.f32 %v560, 1.442695
    %v635 = vpow.pop %v634
    %v636 = vmul.f32 %v561, 1.442695
    %v637 = vpow.pop %v636
    %v638 = vmul.f32 %v562, 1.442695
    %v639 = vpow.pop %v638
    %v640 = vmul.f32 %v563, 1.442695
    %v641 = vpow.pop %v640
    %v642 = vmul.f32 %v564, 1.442695
    %v643 = vpow.pop %v642
    %v644 = vmul.f32 %v565, 1.442695
    %v645 = vpow.pop %v644
    %v646 = vmul.f32 %v567, %v179
    %v647 = vmul.f32 %v569, %v179
    %v648 = vmul.f32 %v571, %v180
    %v649 = vmul.f32 %v573, %v180
    %v650 = vmul.f32 %v575, %v181
    %v651 = vmul.f32 %v577, %v181
    %v652 = vmul.f32 %v579, %v182
    %v653 = vmul.f32 %v581, %v182
    %v654 = vmul.f32 %v583, %v183
    %v655 = vmul.f32 %v585, %v183
    %v656 = vmul.f32 %v587, %v184
    %v657 = vmul.f32 %v589, %v184
    %v658 = vmul.f32 %v591, %v185
    %v659 = vmul.f32 %v593, %v185
    %v660 = vmul.f32 %v595, %v186
    %v661 = vmul.f32 %v597, %v186
    %v662 = vmul.f32 %v599, %v187
    %v663 = vmul.f32 %v601, %v187
    %v664 = vmul.f32 %v603, %v188
    %v665 = vmul.f32 %v605, %v188
    %v666 = vmul.f32 %v607, %v189
    %v667 = vmul.f32 %v609, %v189
    %v668 = vmul.f32 %v611, %v190
    %v669 = vmul.f32 %v613, %v190
    %v670 = vmul.f32 %v615, %v191
    %v671 = vmul.f32 %v617, %v191
    %v672 = vmul.f32 %v619, %v192
    %v673 = vmul.f32 %v621, %v192
    %v674 = vmul.f32 %v623, %v193
    %v675 = vmul.f32 %v625, %v193
    %v676 = vmul.f32 %v627, %v194
    %v677 = vmul.f32 %v629, %v194
    %v678 = vmul.f32 %v631, %v195
    %v679 = vmul.f32 %v633, %v195
    %v680 = vmul.f32 %v635, %v196
    %v681 = vmul.f32 %v637, %v196
    %v682 = vmul.f32 %v639, %v197
    %v683 = vmul.f32 %v641, %v197
    %v684 = vmul.f32 %v643, %v198
    %v685 = vmul.f32 %v645, %v198
    %v686 = vld [vmem:[#allocation2] sm:$0xff]
    %v687 = vld [vmem:[#allocation2 + $0x8] sm:$0xff]
    %v688 = vld [vmem:[#allocation2 + $0x10] sm:$0xff]
    %v689 = vld [vmem:[#allocation2 + $0x18] sm:$0xff]
    %v690 = vld [vmem:[#allocation2 + $0x20] sm:$0xff]
    %v691 = vld [vmem:[#allocation2 + $0x28] sm:$0xff]
    %v692 = vld [vmem:[#allocation2 + $0x30] sm:$0xff]
    %v693 = vld [vmem:[#allocation2 + $0x38] sm:$0xff]
    %v694 = vld [vmem:[#allocation2 + $0x40] sm:$0xff]
    %v695 = vld [vmem:[#allocation2 + $0x48] sm:$0xff]
    %v696 = vld [vmem:[#allocation2 + $0x50] sm:$0xff]
    %v697 = vld [vmem:[#allocation2 + $0x58] sm:$0xff]
    %v698 = vld [vmem:[#allocation2 + $0x60] sm:$0xff]
    %v699 = vld [vmem:[#allocation2 + $0x68] sm:$0xff]
    %v700 = vld [vmem:[#allocation2 + $0x70] sm:$0xff]
    %v701 = vld [vmem:[#allocation2 + $0x78] sm:$0xff]
    %v702 = vld [vmem:[#allocation2 + $0x80] sm:$0xff]
    %v703 = vld [vmem:[#allocation2 + $0x88] sm:$0xff]
    %v704 = vld [vmem:[#allocation2 + $0x90] sm:$0xff]
    %v705 = vld [vmem:[#allocation2 + $0x98] sm:$0xff]
    %v706 = vld [vmem:[#allocation2 + $0xa0] sm:$0xff]
    %v707 = vld [vmem:[#allocation2 + $0xa8] sm:$0xff]
    %v708 = vld [vmem:[#allocation2 + $0xb0] sm:$0xff]
    %v709 = vld [vmem:[#allocation2 + $0xb8] sm:$0xff]
    %v710 = vld [vmem:[#allocation2 + $0xc0] sm:$0xff]
    %v711 = vld [vmem:[#allocation2 + $0xc8] sm:$0xff]
    %v712 = vld [vmem:[#allocation2 + $0xd0] sm:$0xff]
    %v713 = vld [vmem:[#allocation2 + $0xd8] sm:$0xff]
    %v714 = vld [vmem:[#allocation2 + $0xe0] sm:$0xff]
    %v715 = vld [vmem:[#allocation2 + $0xe8] sm:$0xff]
    %v716 = vld [vmem:[#allocation2 + $0xf0] sm:$0xff]
    %v717 = vld [vmem:[#allocation2 + $0xf8] sm:$0xff]
    %v718 = vld [vmem:[%s3] sm:$0x1]
    %v720 = vlaneseq
    %v721 = vshrl.u32 %v720, 7
    %v722 = vsub.s32 0, %v721
    %v723 = vrot.slane %v718, %v722
    %725 = vmatprep.subr.mxu0 0.0
    %726 = vmatpush1.msra.mxu0 %v686
    %727 = vmatprep.subr.mxu0 0.0
    %728 = vmatpush1.msra.mxu0 %v687
    %729 = vmatprep.subr.mxu0 0.0
    %730 = vmatpush1.msra.mxu0 %v688
    %731 = vmatprep.subr.mxu0 0.0
    %732 = vmatpush1.msra.mxu0 %v689
    %733 = vmatprep.subr.mxu0 0.0
    %734 = vmatpush1.msra.mxu0 %v690
    %735 = vmatprep.subr.mxu0 0.0
    %736 = vmatpush1.msra.mxu0 %v691
    %737 = vmatprep.subr.mxu0 0.0
    %738 = vmatpush1.msra.mxu0 %v692
    %739 = vmatprep.subr.mxu0 0.0
    %740 = vmatpush1.msra.mxu0 %v693
    %741 = vmatprep.subr.mxu0 0.0
    %742 = vmatpush1.msra.mxu0 %v694
    %743 = vmatprep.subr.mxu0 0.0
    %744 = vmatpush1.msra.mxu0 %v695
    %745 = vmatprep.subr.mxu0 0.0
    %746 = vmatpush1.msra.mxu0 %v696
    %747 = vmatprep.subr.mxu0 0.0
    %748 = vmatpush1.msra.mxu0 %v697
    %749 = vmatprep.subr.mxu0 0.0
    %750 = vmatpush1.msra.mxu0 %v698
    %751 = vmatprep.subr.mxu0 0.0
    %752 = vmatpush1.msra.mxu0 %v699
    %753 = vmatprep.subr.mxu0 0.0
    %754 = vmatpush1.msra.mxu0 %v700
    %755 = vmatprep.subr.mxu0 0.0
    %756 = vmatpush1.msra.mxu0 %v701
    %757 = vmatprep.subr.mxu0 0.0
    %758 = vmatpush1.msra.mxu0 %v702
    %759 = vmatprep.subr.mxu0 0.0
    %760 = vmatpush1.msra.mxu0 %v703
    %761 = vmatprep.subr.mxu0 0.0
    %762 = vmatpush1.msra.mxu0 %v704
    %763 = vmatprep.subr.mxu0 0.0
    %764 = vmatpush1.msra.mxu0 %v705
    %765 = vmatprep.subr.mxu0 0.0
    %766 = vmatpush1.msra.mxu0 %v706
    %767 = vmatprep.subr.mxu0 0.0
    %768 = vmatpush1.msra.mxu0 %v707
    %769 = vmatprep.subr.mxu0 0.0
    %770 = vmatpush1.msra.mxu0 %v708
    %771 = vmatprep.subr.mxu0 0.0
    %772 = vmatpush1.msra.mxu0 %v709
    %773 = vmatprep.subr.mxu0 0.0
    %774 = vmatpush1.msra.mxu0 %v710
    %775 = vmatprep.subr.mxu0 0.0
    %776 = vmatpush1.msra.mxu0 %v711
    %777 = vmatprep.subr.mxu0 0.0
    %778 = vmatpush1.msra.mxu0 %v712
    %779 = vmatprep.subr.mxu0 0.0
    %780 = vmatpush1.msra.mxu0 %v713
    %781 = vmatprep.subr.mxu0 0.0
    %782 = vmatpush1.msra.mxu0 %v714
    %783 = vmatprep.subr.mxu0 0.0
    %784 = vmatpush1.msra.mxu0 %v715
    %785 = vmatprep.subr.mxu0 0.0
    %786 = vmatpush1.msra.mxu0 %v716
    %787 = vmatprep.subr.mxu0 0.0
    %788 = vmatpush1.msra.mxu0 %v717
    %789 = vmatprep.mubr.f32.mxu0 %v647
    %790 = vmatmul.mubr.f32.gmra.mrb[0].mxu0 %v646
    %v791 = vpop.f32.mrb[0].mxu0
    %v792 = vadd.f32 %v723, %v791
    %v793 = vpop.f32.mrb[0].mxu0
    %794 = vmatprep.mubr.f32.mxu0 %v649
    %795 = vmatmul.mubr.f32.gmra.mrb[0].mxu0 %v648
    %v796 = vpop.f32.mrb[0].mxu0
    %v797 = vadd.f32 %v723, %v796
    %v798 = vpop.f32.mrb[0].mxu0
    %799 = vmatprep.mubr.f32.mxu0 %v651
    %800 = vmatmul.mubr.f32.gmra.mrb[0].mxu0 %v650
    %v801 = vpop.f32.mrb[0].mxu0
    %v802 = vadd.f32 %v723, %v801
    %v803 = vpop.f32.mrb[0].mxu0
    %804 = vmatprep.mubr.f32.mxu0 %v653
    %805 = vmatmul.mubr.f32.gmra.mrb[0].mxu0 %v652
    %v806 = vpop.f32.mrb[0].mxu0
    %v807 = vadd.f32 %v723, %v806
    %v808 = vpop.f32.mrb[0].mxu0
    %809 = vmatprep.mubr.f32.mxu0 %v655
    %810 = vmatmul.mubr.f32.gmra.mrb[0].mxu0 %v654
    %v811 = vpop.f32.mrb[0].mxu0
    %v812 = vadd.f32 %v723, %v811
    %v813 = vpop.f32.mrb[0].mxu0
    %814 = vmatprep.mubr.f32.mxu0 %v657
    %815 = vmatmul.mubr.f32.gmra.mrb[0].mxu0 %v656
    %v816 = vpop.f32.mrb[0].mxu0
    %v817 = vadd.f32 %v723, %v816
    %v818 = vpop.f32.mrb[0].mxu0
    %819 = vmatprep.mubr.f32.mxu0 %v659
    %820 = vmatmul.mubr.f32.gmra.mrb[0].mxu0 %v658
    %v821 = vpop.f32.mrb[0].mxu0
    %v822 = vadd.f32 %v723, %v821
    %v823 = vpop.f32.mrb[0].mxu0
    %824 = vmatprep.mubr.f32.mxu0 %v661
    %825 = vmatmul.mubr.f32.gmra.mrb[0].mxu0 %v660
    %v826 = vpop.f32.mrb[0].mxu0
    %v827 = vadd.f32 %v723, %v826
    %v828 = vpop.f32.mrb[0].mxu0
    %829 = vmatprep.mubr.f32.mxu0 %v663
    %830 = vmatmul.mubr.f32.gmra.mrb[0].mxu0 %v662
    %v831 = vpop.f32.mrb[0].mxu0
    %v832 = vadd.f32 %v723, %v831
    %v833 = vpop.f32.mrb[0].mxu0
    %834 = vmatprep.mubr.f32.mxu0 %v665
    %835 = vmatmul.mubr.f32.gmra.mrb[0].mxu0 %v664
    %v836 = vpop.f32.mrb[0].mxu0
    %v837 = vadd.f32 %v723, %v836
    %v838 = vpop.f32.mrb[0].mxu0
    %839 = vmatprep.mubr.f32.mxu0 %v667
    %840 = vmatmul.mubr.f32.gmra.mrb[0].mxu0 %v666
    %v841 = vpop.f32.mrb[0].mxu0
    %v842 = vadd.f32 %v723, %v841
    %v843 = vpop.f32.mrb[0].mxu0
    %844 = vmatprep.mubr.f32.mxu0 %v669
    %845 = vmatmul.mubr.f32.gmra.mrb[0].mxu0 %v668
    %v846 = vpop.f32.mrb[0].mxu0
    %v847 = vadd.f32 %v723, %v846
    %v848 = vpop.f32.mrb[0].mxu0
    %849 = vmatprep.mubr.f32.mxu0 %v671
    %850 = vmatmul.mubr.f32.gmra.mrb[0].mxu0 %v670
    %v851 = vpop.f32.mrb[0].mxu0
    %v852 = vadd.f32 %v723, %v851
    %v853 = vpop.f32.mrb[0].mxu0
    %854 = vmatprep.mubr.f32.mxu0 %v673
    %855 = vmatmul.mubr.f32.gmra.mrb[0].mxu0 %v672
    %v856 = vpop.f32.mrb[0].mxu0
    %v857 = vadd.f32 %v723, %v856
    %v858 = vpop.f32.mrb[0].mxu0
    %859 = vmatprep.mubr.f32.mxu0 %v675
    %860 = vmatmul.mubr.f32.gmra.mrb[0].mxu0 %v674
    %v861 = vpop.f32.mrb[0].mxu0
    %v862 = vadd.f32 %v723, %v861
    %v863 = vpop.f32.mrb[0].mxu0
    %864 = vmatprep.mubr.f32.mxu0 %v677
    %865 = vmatmul.mubr.f32.gmra.mrb[0].mxu0 %v676
    %v866 = vpop.f32.mrb[0].mxu0
    %v867 = vadd.f32 %v723, %v866
    %v868 = vpop.f32.mrb[0].mxu0
    %869 = vmatprep.mubr.f32.mxu0 %v679
    %870 = vmatmul.mubr.f32.gmra.mrb[0].mxu0 %v678
    %v871 = vpop.f32.mrb[0].mxu0
    %v872 = vadd.f32 %v723, %v871
    %v873 = vpop.f32.mrb[0].mxu0
    %874 = vmatprep.mubr.f32.mxu0 %v681
    %875 = vmatmul.mubr.f32.gmra.mrb[0].mxu0 %v680
    %v876 = vpop.f32.mrb[0].mxu0
    %v877 = vadd.f32 %v723, %v876
    %v878 = vpop.f32.mrb[0].mxu0
    %879 = vmatprep.mubr.f32.mxu0 %v683
    %880 = vmatmul.mubr.f32.gmra.mrb[0].mxu0 %v682
    %v881 = vpop.f32.mrb[0].mxu0
    %v882 = vadd.f32 %v723, %v881
    %v883 = vpop.f32.mrb[0].mxu0
    %884 = vmatprep.mubr.f32.mxu0 %v685
    %885 = vmatmul.mubr.f32.gmra.mrb[0].mxu0 %v684
    %v886 = vpop.f32.mrb[0].mxu0
    %v887 = vadd.f32 %v723, %v886
    %v888 = vpop.f32.mrb[0].mxu0
    %889 = vdwg.mxu0
    %v890 = vmax.f32 %v792, 0.0
    %v891 = vmax.f32 %v797, 0.0
    %v892 = vmax.f32 %v802, 0.0
    %v893 = vmax.f32 %v807, 0.0
    %v894 = vmax.f32 %v812, 0.0
    %v895 = vmax.f32 %v817, 0.0
    %v896 = vmax.f32 %v822, 0.0
    %v897 = vmax.f32 %v827, 0.0
    %v898 = vmax.f32 %v832, 0.0
    %v899 = vmax.f32 %v837, 0.0
    %v900 = vmax.f32 %v842, 0.0
    %v901 = vmax.f32 %v847, 0.0
    %v902 = vmax.f32 %v852, 0.0
    %v903 = vmax.f32 %v857, 0.0
    %v904 = vmax.f32 %v862, 0.0
    %v905 = vmax.f32 %v867, 0.0
    %v906 = vmax.f32 %v872, 0.0
    %v907 = vmax.f32 %v877, 0.0
    %v908 = vmax.f32 %v882, 0.0
    %v909 = vmax.f32 %v887, 0.0
    %v910 = vld [vmem:[%s4] sm:$0xff]
    %v911 = vld [vmem:[%s4 + $0x8] sm:$0xff]
    %v912 = vld [vmem:[%s4 + $0x10] sm:$0xff]
    %v913 = vld [vmem:[%s4 + $0x18] sm:$0xff]
    %v914 = vld [vmem:[%s4 + $0x20] sm:$0xff]
    %v915 = vld [vmem:[%s4 + $0x28] sm:$0xff]
    %v916 = vld [vmem:[%s4 + $0x30] sm:$0xff]
    %v917 = vld [vmem:[%s4 + $0x38] sm:$0xff]
    %v918 = vld [vmem:[%s4 + $0x40] sm:$0xff]
    %v919 = vld [vmem:[%s4 + $0x48] sm:$0xff]
    %v920 = vld [vmem:[%s4 + $0x50] sm:$0xff]
    %v921 = vld [vmem:[%s4 + $0x58] sm:$0xff]
    %v922 = vld [vmem:[%s4 + $0x60] sm:$0xff]
    %v923 = vld [vmem:[%s4 + $0x68] sm:$0xff]
    %v924 = vld [vmem:[%s4 + $0x70] sm:$0xff]
    %v925 = vld [vmem:[%s4 + $0x78] sm:$0xff]
    %v926 = vld [vmem:[%s5] sm:$0x1]
    %v928 = vlaneseq
    %v929 = vshrl.u32 %v928, 7
    %v930 = vsub.s32 0, %v929
    %v931 = vrot.slane %v926, %v930
    %933 = vmatprep.subr.mxu0 0.0
    %934 = vmatpush1.msra.mxu0 %v910
    %935 = vmatprep.subr.mxu0 0.0
    %936 = vmatpush1.msra.mxu0 %v911
    %937 = vmatprep.subr.mxu0 0.0
    %938 = vmatpush1.msra.mxu0 %v912
    %939 = vmatprep.subr.mxu0 0.0
    %940 = vmatpush1.msra.mxu0 %v913
    %941 = vmatprep.subr.mxu0 0.0
    %942 = vmatpush1.msra.mxu0 %v914
    %943 = vmatprep.subr.mxu0 0.0
    %944 = vmatpush1.msra.mxu0 %v915
    %945 = vmatprep.subr.mxu0 0.0
    %946 = vmatpush1.msra.mxu0 %v916
    %947 = vmatprep.subr.mxu0 0.0
    %948 = vmatpush1.msra.mxu0 %v917
    %949 = vmatprep.subr.mxu0 0.0
    %950 = vmatpush1.msra.mxu0 %v918
    %951 = vmatprep.subr.mxu0 0.0
    %952 = vmatpush1.msra.mxu0 %v919
    %953 = vmatprep.subr.mxu0 0.0
    %954 = vmatpush1.msra.mxu0 %v920
    %955 = vmatprep.subr.mxu0 0.0
    %956 = vmatpush1.msra.mxu0 %v921
    %957 = vmatprep.subr.mxu0 0.0
    %958 = vmatpush1.msra.mxu0 %v922
    %959 = vmatprep.subr.mxu0 0.0
    %960 = vmatpush1.msra.mxu0 %v923
    %961 = vmatprep.subr.mxu0 0.0
    %962 = vmatpush1.msra.mxu0 %v924
    %963 = vmatprep.subr.mxu0 0.0
    %964 = vmatpush1.msra.mxu0 %v925
    %965 = vmatprep.subr.mxu0 0.0
    %966 = vmatpush1.msra.mxu0 0.0
    %967 = vmatprep.subr.mxu0 0.0
    %968 = vmatpush1.msra.mxu0 0.0
    %969 = vmatprep.subr.mxu0 0.0
    %970 = vmatpush1.msra.mxu0 0.0
    %971 = vmatprep.subr.mxu0 0.0
    %972 = vmatpush1.msra.mxu0 0.0
    %973 = vmatprep.subr.mxu0 0.0
    %974 = vmatpush1.msra.mxu0 0.0
    %975 = vmatprep.subr.mxu0 0.0
    %976 = vmatpush1.msra.mxu0 0.0
    %977 = vmatprep.subr.mxu0 0.0
    %978 = vmatpush1.msra.mxu0 0.0
    %979 = vmatprep.subr.mxu0 0.0
    %980 = vmatpush1.msra.mxu0 0.0
    %981 = vmatprep.subr.mxu0 0.0
    %982 = vmatpush1.msra.mxu0 0.0
    %983 = vmatprep.subr.mxu0 0.0
    %984 = vmatpush1.msra.mxu0 0.0
    %985 = vmatprep.subr.mxu0 0.0
    %986 = vmatpush1.msra.mxu0 0.0
    %987 = vmatprep.subr.mxu0 0.0
    %988 = vmatpush1.msra.mxu0 0.0
    %989 = vmatprep.subr.mxu0 0.0
    %990 = vmatpush1.msra.mxu0 0.0
    %991 = vmatprep.subr.mxu0 0.0
    %992 = vmatpush1.msra.mxu0 0.0
    %993 = vmatprep.subr.mxu0 0.0
    %994 = vmatpush1.msra.mxu0 0.0
    %995 = vmatprep.subr.mxu0 0.0
    %996 = vmatpush1.msra.mxu0 0.0
    %997 = vmatprep.mubr.f32.mxu0 0.0
    %998 = vmatmul.mubr.f32.gmra.mrb[0].mxu0 %v890
    %v999 = vpop.f32.mrb[0].mxu0
    %v1000 = vadd.f32 %v931, %v999
    %v1001 = vpop.f32.mrb[0].mxu0
    %1002 = vmatprep.mubr.f32.mxu0 0.0
    %1003 = vmatmul.mubr.f32.gmra.mrb[0].mxu0 %v891
    %v1004 = vpop.f32.mrb[0].mxu0
    %v1005 = vadd.f32 %v931, %v1004
    %v1006 = vpop.f32.mrb[0].mxu0
    %1007 = vmatprep.mubr.f32.mxu0 0.0
    %1008 = vmatmul.mubr.f32.gmra.mrb[0].mxu0 %v892
    %v1009 = vpop.f32.mrb[0].mxu0
    %v1010 = vadd.f32 %v931, %v1009
    %v1011 = vpop.f32.mrb[0].mxu0
    %1012 = vmatprep.mubr.f32.mxu0 0.0
    %1013 = vmatmul.mubr.f32.gmra.mrb[0].mxu0 %v893
    %v1014 = vpop.f32.mrb[0].mxu0
    %v1015 = vadd.f32 %v931, %v1014
    %v1016 = vpop.f32.mrb[0].mxu0
    %1017 = vmatprep.mubr.f32.mxu0 0.0
    %1018 = vmatmul.mubr.f32.gmra.mrb[0].mxu0 %v894
    %v1019 = vpop.f32.mrb[0].mxu0
    %v1020 = vadd.f32 %v931, %v1019
    %v1021 = vpop.f32.mrb[0].mxu0
    %1022 = vmatprep.mubr.f32.mxu0 0.0
    %1023 = vmatmul.mubr.f32.gmra.mrb[0].mxu0 %v895
    %v1024 = vpop.f32.mrb[0].mxu0
    %v1025 = vadd.f32 %v931, %v1024
    %v1026 = vpop.f32.mrb[0].mxu0
    %1027 = vmatprep.mubr.f32.mxu0 0.0
    %1028 = vmatmul.mubr.f32.gmra.mrb[0].mxu0 %v896
    %v1029 = vpop.f32.mrb[0].mxu0
    %v1030 = vadd.f32 %v931, %v1029
    %v1031 = vpop.f32.mrb[0].mxu0
    %1032 = vmatprep.mubr.f32.mxu0 0.0
    %1033 = vmatmul.mubr.f32.gmra.mrb[0].mxu0 %v897
    %v1034 = vpop.f32.mrb[0].mxu0
    %v1035 = vadd.f32 %v931, %v1034
    %v1036 = vpop.f32.mrb[0].mxu0
    %1037 = vmatprep.mubr.f32.mxu0 0.0
    %1038 = vmatmul.mubr.f32.gmra.mrb[0].mxu0 %v898
    %v1039 = vpop.f32.mrb[0].mxu0
    %v1040 = vadd.f32 %v931, %v1039
    %v1041 = vpop.f32.mrb[0].mxu0
    %1042 = vmatprep.mubr.f32.mxu0 0.0
    %1043 = vmatmul.mubr.f32.gmra.mrb[0].mxu0 %v899
    %v1044 = vpop.f32.mrb[0].mxu0
    %v1045 = vadd.f32 %v931, %v1044
    %v1046 = vpop.f32.mrb[0].mxu0
    %1047 = vmatprep.mubr.f32.mxu0 0.0
    %1048 = vmatmul.mubr.f32.gmra.mrb[0].mxu0 %v900
    %v1049 = vpop.f32.mrb[0].mxu0
    %v1050 = vadd.f32 %v931, %v1049
    %v1051 = vpop.f32.mrb[0].mxu0
    %1052 = vmatprep.mubr.f32.mxu0 0.0
    %1053 = vmatmul.mubr.f32.gmra.mrb[0].mxu0 %v901
    %v1054 = vpop.f32.mrb[0].mxu0
    %v1055 = vadd.f32 %v931, %v1054
    %v1056 = vpop.f32.mrb[0].mxu0
    %1057 = vmatprep.mubr.f32.mxu0 0.0
    %1058 = vmatmul.mubr.f32.gmra.mrb[0].mxu0 %v902
    %v1059 = vpop.f32.mrb[0].mxu0
    %v1060 = vadd.f32 %v931, %v1059
    %v1061 = vpop.f32.mrb[0].mxu0
    %1062 = vmatprep.mubr.f32.mxu0 0.0
    %1063 = vmatmul.mubr.f32.gmra.mrb[0].mxu0 %v903
    %v1064 = vpop.f32.mrb[0].mxu0
    %v1065 = vadd.f32 %v931, %v1064
    %v1066 = vpop.f32.mrb[0].mxu0
    %1067 = vmatprep.mubr.f32.mxu0 0.0
    %1068 = vmatmul.mubr.f32.gmra.mrb[0].mxu0 %v904
    %v1069 = vpop.f32.mrb[0].mxu0
    %v1070 = vadd.f32 %v931, %v1069
    %v1071 = vpop.f32.mrb[0].mxu0
    %1072 = vmatprep.mubr.f32.mxu0 0.0
    %1073 = vmatmul.mubr.f32.gmra.mrb[0].mxu0 %v905
    %v1074 = vpop.f32.mrb[0].mxu0
    %v1075 = vadd.f32 %v931, %v1074
    %v1076 = vpop.f32.mrb[0].mxu0
    %1077 = vmatprep.mubr.f32.mxu0 0.0
    %1078 = vmatmul.mubr.f32.gmra.mrb[0].mxu0 %v906
    %v1079 = vpop.f32.mrb[0].mxu0
    %v1080 = vadd.f32 %v931, %v1079
    %v1081 = vpop.f32.mrb[0].mxu0
    %1082 = vmatprep.mubr.f32.mxu0 0.0
    %1083 = vmatmul.mubr.f32.gmra.mrb[0].mxu0 %v907
    %v1084 = vpop.f32.mrb[0].mxu0
    %v1085 = vadd.f32 %v931, %v1084
    %v1086 = vpop.f32.mrb[0].mxu0
    %1087 = vmatprep.mubr.f32.mxu0 0.0
    %1088 = vmatmul.mubr.f32.gmra.mrb[0].mxu0 %v908
    %v1089 = vpop.f32.mrb[0].mxu0
    %v1090 = vadd.f32 %v931, %v1089
    %v1091 = vpop.f32.mrb[0].mxu0
    %1092 = vmatprep.mubr.f32.mxu0 0.0
    %1093 = vmatmul.mubr.f32.gmra.mrb[0].mxu0 %v909
    %v1094 = vpop.f32.mrb[0].mxu0
    %v1095 = vadd.f32 %v931, %v1094
    %v1096 = vpop.f32.mrb[0].mxu0
    %1097 = vdwg.mxu0
    %1098 = vst [vmem:[#allocation5] sm:$0xff] %v1000
    %1099 = vst [vmem:[#allocation5 + $0x8] sm:$0xff] %v1005
    %1100 = vst [vmem:[#allocation5 + $0x10] sm:$0xff] %v1010
    %1101 = vst [vmem:[#allocation5 + $0x18] sm:$0xff] %v1015
    %1102 = vst [vmem:[#allocation5 + $0x20] sm:$0xff] %v1020
    %1103 = vst [vmem:[#allocation5 + $0x28] sm:$0xff] %v1025
    %1104 = vst [vmem:[#allocation5 + $0x30] sm:$0xff] %v1030
    %1105 = vst [vmem:[#allocation5 + $0x38] sm:$0xff] %v1035
    %1106 = vst [vmem:[#allocation5 + $0x40] sm:$0xff] %v1040
    %1107 = vst [vmem:[#allocation5 + $0x48] sm:$0xff] %v1045
    %1108 = vst [vmem:[#allocation5 + $0x50] sm:$0xff] %v1050
    %1109 = vst [vmem:[#allocation5 + $0x58] sm:$0xff] %v1055
    %1110 = vst [vmem:[#allocation5 + $0x60] sm:$0xff] %v1060
    %1111 = vst [vmem:[#allocation5 + $0x68] sm:$0xff] %v1065
    %1112 = vst [vmem:[#allocation5 + $0x70] sm:$0xff] %v1070
    %1113 = vst [vmem:[#allocation5 + $0x78] sm:$0xff] %v1075
    %1114 = vst [vmem:[#allocation5 + $0x80] sm:$0xff] %v1080
    %1115 = vst [vmem:[#allocation5 + $0x88] sm:$0xff] %v1085
    %1116 = vst [vmem:[#allocation5 + $0x90] sm:$0xff] %v1090
    %1117 = vst [vmem:[#allocation5 + $0x98] sm:$0xff] %v1095
    // Predicated region
    $region30: #{tpu_custom_call.1} parent=1 // pred_check
      _
    $region31: #{tpu_custom_call.1} parent=1 // pred_check_branch
      %1119 = sbr.rel (0) target = $region33
    $region32: #{tpu_custom_call.1} parent=1 // pred_region
      %s1121 = ssub.s32 2560, 2560
      %1122 = vsyncadd [#allocation4], %s1121
      %s1123 = sshll.u32 [#allocation5], 4
      %s1124 = int_to_ptr.vmem [resolvable:$true] %s1123
      %1129 = dma.vmem_to_hbm [thread:$0]  %s1124, 2560, %s6, [#allocation4], 128, 128, 8
    $region33: #{tpu_custom_call.1} parent=1 // pred_fallthru
      _
    // Predicated region
    $region34: #{tpu_custom_call.1} parent=1 // pred_check
      _
    $region35: #{tpu_custom_call.1} parent=1 // pred_check_branch
      %1131 = sbr.rel (0) target = $region37
    $region36: #{tpu_custom_call.1} parent=1 // pred_region
      %1132 = dma.done [#allocation4], 2560
    $region37: #{tpu_custom_call.1} parent=1 // pred_fallthru
      _
    %1133 = vsyncpa [#allocation3], 1
    %1134 = vsyncpa [#allocation4], 1

</llo_original>
